<compile_context>
chip_gen: v6e
topology: v6e:2x2x1
jax: 0.10.0
libtpu: 0.0.40
codegen_flags: <defaults>
</compile_context>

<pallas_src>
import functools

import jax
import jax.numpy as jnp
import numpy as np
from jax.experimental import pallas as pl
from jax.experimental.pallas import tpu as pltpu

EPS = 1e-5

# Conv matmul operand dtype.  bf16 hits the native MXU path on v5e/v6e/v7x
# (f32 accumulation is preserved via preferred_element_type).
CONV_DTYPE = jnp.bfloat16


def residual_block_kernel(x_ref, w1_ref, w2_ref, g1_ref, b1_ref, g2_ref,
                          b2_ref, o_ref, *, K, pad, L, NB):
    C, NP = x_ref.shape              # NP = padded B*L (multiple of 128)
    inv_n = 1.0 / float(NB)          # BN statistic count = true B*L

    x = x_ref[...]                   # (C, NP) f32, batch folded into lanes

    # In-kernel position bookkeeping (no HBM traffic for `pos`).
    col = jax.lax.broadcasted_iota(jnp.int32, (1, NP), 1)   # global column
    l = col % L                                              # position in batch
    is_real = col < NB                                       # not a pad column

    # Hoisted per-tap source-validity masks, shared by conv1 and conv2.
    shifts = [k - pad for k in range(K)]
    masks = [jnp.logical_and(jnp.logical_and(l + s >= 0, l + s < L), is_real)
             for s in shifts]

    def im2col(v):
        """K lane-rolled + masked copies of v stacked along the contraction dim."""
        cols = []
        for s, m in zip(shifts, masks):
            z = v if s == 0 else pltpu.roll(v, (-s) % NP, 1)   # z[:, n] = v[:, n+s]
            cols.append(jnp.where(m, z, 0.0))
        return jnp.concatenate(cols, axis=0).astype(CONV_DTYPE)   # (K*C, NP)

    def conv_same(v, wf_ref):
        """'same' 1-D conv over all batches: a single lane-dense MXU matmul."""
        return jnp.dot(wf_ref[...].astype(CONV_DTYPE), im2col(v),
                       preferred_element_type=jnp.float32)         # (C, NP) f32

    def batchnorm(v, g_ref, b_ref):
        """Training-mode BN: fused single-pass stats, biased variance.

        Padded columns of v are exactly zero (masked out of the conv), so the
        sums only see the NB real columns; variance is clamped before rsqrt.
        """
        s1 = jnp.sum(v, axis=1, keepdims=True)         # (C, 1)
        s2 = jnp.sum(v * v, axis=1, keepdims=True)     # (C, 1)
        mean = s1 * inv_n
        var = jnp.maximum(s2 * inv_n - mean * mean, 0.0)
        return (v - mean) * jax.lax.rsqrt(var + EPS) * g_ref[...] + b_ref[...]

    h = jnp.maximum(batchnorm(conv_same(x, w1_ref), g1_ref, b1_ref), 0.0)
    out = batchnorm(conv_same(h, w2_ref), g2_ref, b2_ref)
    o_ref[...] = jnp.maximum(out + x, 0.0)


def _vmem_limit_bytes():
    """~75% of physical VMEM: ≈96 MiB on v5e/v6e, ≈48 MiB on v7x."""
    cap = 64 << 20
    try:
        info = pltpu.get_tpu_info()
        cap = int(getattr(info, "vmem_capacity_bytes", cap))
    except Exception:
        pass
    return min(cap * 3 // 4, 100 << 20)


def residual_block(x, w1, w2, g1, b1, g2, b2):
    """x: (B, C, L); w1, w2: (C_out, C_in, K) PyTorch conv1d layout; g*, b*: (C,)."""
    B, C, L = x.shape
    K = w1.shape[-1]
    pad = K // 2
    NB = B * L
    NP = max(128, ((NB + 127) // 128) * 128)   # lane-dense padded width

    # Layout plumbing (XLA side): fold batch into the lane axis -> (C, B*L),
    # zero-pad to a 128-multiple.
    # TODO(synk): at production sizes fold this transpose/pad into a gridded
    # kernel's BlockSpecs (block over batch) instead of extra HBM passes.
    x2 = jnp.transpose(x, (1, 0, 2)).reshape(C, NB).astype(jnp.float32)
    x2 = jnp.pad(x2, ((0, 0), (0, NP - NB)))

    # Fused conv weights: (C_out, C_in, K) -> (C_out, K*C_in), row index
    # k*C_in + c_in, matching the im2col stacking order in the kernel.
    # TODO(synk): for tiny C (<8 f32 / <16 bf16 sublanes) the MXU is mostly
    # idle; channel-group packing would help, kept simple here.
    wf1 = jnp.transpose(w1, (0, 2, 1)).reshape(C, K * C).astype(CONV_DTYPE)
    wf2 = jnp.transpose(w2, (0, 2, 1)).reshape(C, K * C).astype(CONV_DTYPE)
    g1r = g1.reshape(C, 1).astype(jnp.float32)
    b1r = b1.reshape(C, 1).astype(jnp.float32)
    g2r = g2.reshape(C, 1).astype(jnp.float32)
    b2r = b2.reshape(C, 1).astype(jnp.float32)

    kernel = functools.partial(residual_block_kernel, K=K, pad=pad, L=L, NB=NB)
    itemsize = jnp.dtype(CONV_DTYPE).itemsize
    cost = pl.CostEstimate(
        flops=2 * 2 * C * (K * C) * NB,               # two convs, 2 flops / MAC
        transcendentals=2 * C,                        # two rsqrt per channel
        bytes_accessed=4 * 2 * C * NP + 2 * K * C * C * itemsize + 4 * 4 * C,
    )
    vmem_spec = functools.partial(pl.BlockSpec,
                                  memory_space=pltpu.MemorySpace.VMEM)

    out2 = pl.pallas_call(
        kernel,
        out_shape=jax.ShapeDtypeStruct((C, NP), jnp.float32),
        in_specs=[vmem_spec() for _ in range(7)],
        out_specs=vmem_spec(),
        compiler_params=pltpu.CompilerParams(
            vmem_limit_bytes=_vmem_limit_bytes()),
        cost_estimate=cost,
    )(x2, wf1, wf2, g1r, b1r, g2r, b2r)

    return jnp.transpose(out2[:, :NB].reshape(C, B, L), (1, 0, 2))


def residual_block_ref(x, w1, w2, g1, b1, g2, b2):
    """Pure-JAX reference mirroring the PyTorch forward (training-mode BN)."""
    pad = w1.shape[-1] // 2
    dn = ('NCH', 'OIH', 'NCH')

    def conv(v, w):
        return jax.lax.conv_general_dilated(v, w, (1,), [(pad, pad)],
                                            dimension_numbers=dn)

    def bn(v, g, b):
        mean = jnp.mean(v, axis=(0, 2), keepdims=True)
        var = jnp.mean((v - mean) ** 2, axis=(0, 2), keepdims=True)
        return (v - mean) * jax.lax.rsqrt(var + EPS) * g.reshape(1, -1, 1) \
            + b.reshape(1, -1, 1)

    out = jax.nn.relu(bn(conv(x, w1), g1, b1))
    out = bn(conv(out, w2), g2, b2) + x
    return jax.nn.relu(out)


if __name__ == "__main__":
    B, C, L, K = 2, 4, 16, 3

    key = jax.random.PRNGKey(0)
    kx, kw1, kw2 = jax.random.split(key, 3)

    x = jax.random.normal(kx, (B, C, L), dtype=jnp.float32)

    # Deterministic conv weight init (kaiming-uniform-like bound, bias=False).
    bound = 1.0 / np.sqrt(C * K)
    w1 = jax.random.uniform(kw1, (C, C, K), jnp.float32, -bound, bound)
    w2 = jax.random.uniform(kw2, (C, C, K), jnp.float32, -bound, bound)

    # BatchNorm affine params at PyTorch default init: weight=1, bias=0.
    g1 = jnp.ones((C,), jnp.float32)
    b1 = jnp.zeros((C,), jnp.float32)
    g2 = jnp.ones((C,), jnp.float32)
    b2 = jnp.zeros((C,), jnp.float32)

    out = residual_block(x, w1, w2, g1, b1, g2, b2)
    out = jax.block_until_ready(out)

    ref = jax.block_until_ready(residual_block_ref(x, w1, w2, g1, b1, g2, b2))
    # Tolerance accounts for bf16 conv operands (f32 accumulation); set
    # CONV_DTYPE = jnp.float32 for ~1e-6 parity.
    np.testing.assert_allclose(np.asarray(out), np.asarray(ref),
                               rtol=5e-2, atol=5e-2)

    print("KERNEL_OK")
</pallas_src>

<mosaic_0001>
module attributes {stable_mosaic.version = 11 : i64} {
  func.func @residual_block_kernel(%arg0: memref<4x128xf32, #tpu.memory_space<vmem>>, %arg1: memref<4x12xbf16, #tpu.memory_space<vmem>>, %arg2: memref<4x12xbf16, #tpu.memory_space<vmem>>, %arg3: memref<4x1xf32, #tpu.memory_space<vmem>>, %arg4: memref<4x1xf32, #tpu.memory_space<vmem>>, %arg5: memref<4x1xf32, #tpu.memory_space<vmem>>, %arg6: memref<4x1xf32, #tpu.memory_space<vmem>>, %arg7: memref<4x128xf32, #tpu.memory_space<vmem>>) attributes {dimension_semantics = [], scalar_prefetch = 0 : i64, scratch_operands = 0 : i64, tpu.core_type = #tpu.core_type<tc>} {
    %c0 = arith.constant 0 : index
    %c0_0 = arith.constant 0 : index
    %0 = vector.load %arg0[%c0, %c0_0] : memref<4x128xf32, #tpu.memory_space<vmem>>, vector<4x128xf32>
    %1 = tpu.iota {dimensions = array<i32: 1>} : vector<1x128xi32>
    %c16_i32 = arith.constant 16 : i32
    %c0_i32 = arith.constant 0 : i32
    %2 = arith.cmpi eq, %c16_i32, %c0_i32 : i32
    %c1_i32 = arith.constant 1 : i32
    %3 = arith.select %2, %c1_i32, %c16_i32 : i32
    %4 = vector.broadcast %3 : i32 to vector<1x128xi32>
    %5 = arith.remsi %1, %4 : vector<1x128xi32>
    %c0_i32_1 = arith.constant 0 : i32
    %6 = vector.broadcast %c0_i32_1 : i32 to vector<1x128xi32>
    %7 = arith.cmpi ne, %5, %6 : vector<1x128xi32>
    %c0_i32_2 = arith.constant 0 : i32
    %8 = vector.broadcast %c0_i32_2 : i32 to vector<1x128xi32>
    %9 = arith.cmpi slt, %5, %8 : vector<1x128xi32>
    %c0_i32_3 = arith.constant 0 : i32
    %10 = arith.cmpi slt, %3, %c0_i32_3 : i32
    %11 = vector.broadcast %10 : i1 to vector<1x128xi1>
    %12 = vector.broadcast %11 : vector<1x128xi1> to vector<1x128xi1>
    %13 = arith.xori %9, %12 : vector<1x128xi1>
    %14 = arith.andi %13, %7 : vector<1x128xi1>
    %15 = vector.broadcast %3 : i32 to vector<1x128xi32>
    %16 = arith.addi %5, %15 : vector<1x128xi32>
    %17 = arith.select %14, %16, %5 : vector<1x128xi1>, vector<1x128xi32>
    %c32_i32 = arith.constant 32 : i32
    %18 = vector.broadcast %c32_i32 : i32 to vector<1x128xi32>
    %19 = arith.cmpi slt, %1, %18 : vector<1x128xi32>
    %c-1_i32 = arith.constant -1 : i32
    %20 = vector.broadcast %c-1_i32 : i32 to vector<1x128xi32>
    %21 = arith.addi %17, %20 : vector<1x128xi32>
    %c0_i32_4 = arith.constant 0 : i32
    %22 = vector.broadcast %c0_i32_4 : i32 to vector<1x128xi32>
    %23 = arith.cmpi sge, %21, %22 : vector<1x128xi32>
    %c-1_i32_5 = arith.constant -1 : i32
    %24 = vector.broadcast %c-1_i32_5 : i32 to vector<1x128xi32>
    %25 = arith.addi %17, %24 : vector<1x128xi32>
    %c16_i32_6 = arith.constant 16 : i32
    %26 = vector.broadcast %c16_i32_6 : i32 to vector<1x128xi32>
    %27 = arith.cmpi slt, %25, %26 : vector<1x128xi32>
    %28 = arith.andi %23, %27 : vector<1x128xi1>
    %29 = arith.andi %28, %19 : vector<1x128xi1>
    %c0_i32_7 = arith.constant 0 : i32
    %30 = vector.broadcast %c0_i32_7 : i32 to vector<1x128xi32>
    %31 = arith.addi %17, %30 : vector<1x128xi32>
    %c0_i32_8 = arith.constant 0 : i32
    %32 = vector.broadcast %c0_i32_8 : i32 to vector<1x128xi32>
    %33 = arith.cmpi sge, %31, %32 : vector<1x128xi32>
    %c0_i32_9 = arith.constant 0 : i32
    %34 = vector.broadcast %c0_i32_9 : i32 to vector<1x128xi32>
    %35 = arith.addi %17, %34 : vector<1x128xi32>
    %c16_i32_10 = arith.constant 16 : i32
    %36 = vector.broadcast %c16_i32_10 : i32 to vector<1x128xi32>
    %37 = arith.cmpi slt, %35, %36 : vector<1x128xi32>
    %38 = arith.andi %33, %37 : vector<1x128xi1>
    %39 = arith.andi %38, %19 : vector<1x128xi1>
    %c1_i32_11 = arith.constant 1 : i32
    %40 = vector.broadcast %c1_i32_11 : i32 to vector<1x128xi32>
    %41 = arith.addi %17, %40 : vector<1x128xi32>
    %c0_i32_12 = arith.constant 0 : i32
    %42 = vector.broadcast %c0_i32_12 : i32 to vector<1x128xi32>
    %43 = arith.cmpi sge, %41, %42 : vector<1x128xi32>
    %c1_i32_13 = arith.constant 1 : i32
    %44 = vector.broadcast %c1_i32_13 : i32 to vector<1x128xi32>
    %45 = arith.addi %17, %44 : vector<1x128xi32>
    %c16_i32_14 = arith.constant 16 : i32
    %46 = vector.broadcast %c16_i32_14 : i32 to vector<1x128xi32>
    %47 = arith.cmpi slt, %45, %46 : vector<1x128xi32>
    %48 = arith.andi %43, %47 : vector<1x128xi1>
    %49 = arith.andi %48, %19 : vector<1x128xi1>
    %c0_15 = arith.constant 0 : index
    %c0_16 = arith.constant 0 : index
    %50 = vector.load %arg1[%c0_15, %c0_16] : memref<4x12xbf16, #tpu.memory_space<vmem>>, vector<4x12xbf16>
    %c1_i32_17 = arith.constant 1 : i32
    %51 = tpu.dynamic_rotate %0 by %c1_i32_17 dim 1 : vector<4x128xf32>, i32 -> vector<4x128xf32>
    %cst = arith.constant 0.000000e+00 : f32
    %52 = vector.shape_cast %29 : vector<1x128xi1> to vector<1x128xi1>
    %53 = vector.broadcast %52 : vector<1x128xi1> to vector<4x128xi1>
    %54 = vector.broadcast %cst : f32 to vector<4x128xf32>
    %55 = arith.select %53, %51, %54 : vector<4x128xi1>, vector<4x128xf32>
    %cst_18 = arith.constant 0.000000e+00 : f32
    %56 = vector.shape_cast %39 : vector<1x128xi1> to vector<1x128xi1>
    %57 = vector.broadcast %56 : vector<1x128xi1> to vector<4x128xi1>
    %58 = vector.broadcast %cst_18 : f32 to vector<4x128xf32>
    %59 = arith.select %57, %0, %58 : vector<4x128xi1>, vector<4x128xf32>
    %c127_i32 = arith.constant 127 : i32
    %60 = tpu.dynamic_rotate %0 by %c127_i32 dim 1 : vector<4x128xf32>, i32 -> vector<4x128xf32>
    %cst_19 = arith.constant 0.000000e+00 : f32
    %61 = vector.shape_cast %49 : vector<1x128xi1> to vector<1x128xi1>
    %62 = vector.broadcast %61 : vector<1x128xi1> to vector<4x128xi1>
    %63 = vector.broadcast %cst_19 : f32 to vector<4x128xf32>
    %64 = arith.select %62, %60, %63 : vector<4x128xi1>, vector<4x128xf32>
    %65 = tpu.concatenate %55, %59, %64 in 0 : vector<4x128xf32>, vector<4x128xf32>, vector<4x128xf32> -> vector<12x128xf32>
    %66 = arith.truncf %65 : vector<12x128xf32> to vector<12x128xbf16>
    %cst_20 = arith.constant dense<0.000000e+00> : vector<4x128xf32>
    %67 = tpu.matmul %50, %66, %cst_20 {dimension_numbers = #tpu.dot_dimension_numbers<[1], [0], [0], [1], [0, 0, 1, 1], [], []>} : vector<4x12xbf16>, vector<12x128xbf16>, vector<4x128xf32> -> vector<4x128xf32>
    %cst_21 = arith.constant dense<0.000000e+00> : vector<4xf32>
    %68 = vector.multi_reduction <add>, %67, %cst_21 [1] : vector<4x128xf32> to vector<4xf32>
    %69 = vector.shape_cast %68 : vector<4xf32> to vector<4x1xf32>
    %70 = arith.mulf %67, %67 : vector<4x128xf32>
    %cst_22 = arith.constant dense<0.000000e+00> : vector<4xf32>
    %71 = vector.multi_reduction <add>, %70, %cst_22 [1] : vector<4x128xf32> to vector<4xf32>
    %72 = vector.shape_cast %71 : vector<4xf32> to vector<4x1xf32>
    %cst_23 = arith.constant 3.125000e-02 : f32
    %73 = vector.broadcast %cst_23 : f32 to vector<4x1xf32>
    %74 = arith.mulf %69, %73 : vector<4x1xf32>
    %cst_24 = arith.constant 3.125000e-02 : f32
    %75 = vector.broadcast %cst_24 : f32 to vector<4x1xf32>
    %76 = arith.mulf %72, %75 : vector<4x1xf32>
    %77 = arith.mulf %74, %74 : vector<4x1xf32>
    %78 = arith.subf %76, %77 : vector<4x1xf32>
    %cst_25 = arith.constant 0.000000e+00 : f32
    %79 = vector.broadcast %cst_25 : f32 to vector<4x1xf32>
    %80 = arith.maximumf %78, %79 : vector<4x1xf32>
    %81 = vector.broadcast %74 : vector<4x1xf32> to vector<4x128xf32>
    %82 = arith.subf %67, %81 : vector<4x128xf32>
    %cst_26 = arith.constant 9.99999974E-6 : f32
    %83 = vector.broadcast %cst_26 : f32 to vector<4x1xf32>
    %84 = arith.addf %80, %83 : vector<4x1xf32>
    %85 = math.rsqrt %84 : vector<4x1xf32>
    %86 = vector.broadcast %85 : vector<4x1xf32> to vector<4x128xf32>
    %87 = arith.mulf %82, %86 : vector<4x128xf32>
    %c0_27 = arith.constant 0 : index
    %c0_28 = arith.constant 0 : index
    %88 = vector.load %arg3[%c0_27, %c0_28] : memref<4x1xf32, #tpu.memory_space<vmem>>, vector<4x1xf32>
    %89 = vector.broadcast %88 : vector<4x1xf32> to vector<4x128xf32>
    %90 = arith.mulf %87, %89 : vector<4x128xf32>
    %c0_29 = arith.constant 0 : index
    %c0_30 = arith.constant 0 : index
    %91 = vector.load %arg4[%c0_29, %c0_30] : memref<4x1xf32, #tpu.memory_space<vmem>>, vector<4x1xf32>
    %92 = vector.broadcast %91 : vector<4x1xf32> to vector<4x128xf32>
    %93 = arith.addf %90, %92 : vector<4x128xf32>
    %cst_31 = arith.constant 0.000000e+00 : f32
    %94 = vector.broadcast %cst_31 : f32 to vector<4x128xf32>
    %95 = arith.maximumf %93, %94 : vector<4x128xf32>
    %c0_32 = arith.constant 0 : index
    %c0_33 = arith.constant 0 : index
    %96 = vector.load %arg2[%c0_32, %c0_33] : memref<4x12xbf16, #tpu.memory_space<vmem>>, vector<4x12xbf16>
    %c1_i32_34 = arith.constant 1 : i32
    %97 = tpu.dynamic_rotate %95 by %c1_i32_34 dim 1 : vector<4x128xf32>, i32 -> vector<4x128xf32>
    %cst_35 = arith.constant 0.000000e+00 : f32
    %98 = vector.shape_cast %29 : vector<1x128xi1> to vector<1x128xi1>
    %99 = vector.broadcast %98 : vector<1x128xi1> to vector<4x128xi1>
    %100 = vector.broadcast %cst_35 : f32 to vector<4x128xf32>
    %101 = arith.select %99, %97, %100 : vector<4x128xi1>, vector<4x128xf32>
    %cst_36 = arith.constant 0.000000e+00 : f32
    %102 = vector.shape_cast %39 : vector<1x128xi1> to vector<1x128xi1>
    %103 = vector.broadcast %102 : vector<1x128xi1> to vector<4x128xi1>
    %104 = vector.broadcast %cst_36 : f32 to vector<4x128xf32>
    %105 = arith.select %103, %95, %104 : vector<4x128xi1>, vector<4x128xf32>
    %c127_i32_37 = arith.constant 127 : i32
    %106 = tpu.dynamic_rotate %95 by %c127_i32_37 dim 1 : vector<4x128xf32>, i32 -> vector<4x128xf32>
    %cst_38 = arith.constant 0.000000e+00 : f32
    %107 = vector.shape_cast %49 : vector<1x128xi1> to vector<1x128xi1>
    %108 = vector.broadcast %107 : vector<1x128xi1> to vector<4x128xi1>
    %109 = vector.broadcast %cst_38 : f32 to vector<4x128xf32>
    %110 = arith.select %108, %106, %109 : vector<4x128xi1>, vector<4x128xf32>
    %111 = tpu.concatenate %101, %105, %110 in 0 : vector<4x128xf32>, vector<4x128xf32>, vector<4x128xf32> -> vector<12x128xf32>
    %112 = arith.truncf %111 : vector<12x128xf32> to vector<12x128xbf16>
    %cst_39 = arith.constant dense<0.000000e+00> : vector<4x128xf32>
    %113 = tpu.matmul %96, %112, %cst_39 {dimension_numbers = #tpu.dot_dimension_numbers<[1], [0], [0], [1], [0, 0, 1, 1], [], []>} : vector<4x12xbf16>, vector<12x128xbf16>, vector<4x128xf32> -> vector<4x128xf32>
    %cst_40 = arith.constant dense<0.000000e+00> : vector<4xf32>
    %114 = vector.multi_reduction <add>, %113, %cst_40 [1] : vector<4x128xf32> to vector<4xf32>
    %115 = vector.shape_cast %114 : vector<4xf32> to vector<4x1xf32>
    %116 = arith.mulf %113, %113 : vector<4x128xf32>
    %cst_41 = arith.constant dense<0.000000e+00> : vector<4xf32>
    %117 = vector.multi_reduction <add>, %116, %cst_41 [1] : vector<4x128xf32> to vector<4xf32>
    %118 = vector.shape_cast %117 : vector<4xf32> to vector<4x1xf32>
    %cst_42 = arith.constant 3.125000e-02 : f32
    %119 = vector.broadcast %cst_42 : f32 to vector<4x1xf32>
    %120 = arith.mulf %115, %119 : vector<4x1xf32>
    %cst_43 = arith.constant 3.125000e-02 : f32
    %121 = vector.broadcast %cst_43 : f32 to vector<4x1xf32>
    %122 = arith.mulf %118, %121 : vector<4x1xf32>
    %123 = arith.mulf %120, %120 : vector<4x1xf32>
    %124 = arith.subf %122, %123 : vector<4x1xf32>
    %cst_44 = arith.constant 0.000000e+00 : f32
    %125 = vector.broadcast %cst_44 : f32 to vector<4x1xf32>
    %126 = arith.maximumf %124, %125 : vector<4x1xf32>
    %127 = vector.broadcast %120 : vector<4x1xf32> to vector<4x128xf32>
    %128 = arith.subf %113, %127 : vector<4x128xf32>
    %cst_45 = arith.constant 9.99999974E-6 : f32
    %129 = vector.broadcast %cst_45 : f32 to vector<4x1xf32>
    %130 = arith.addf %126, %129 : vector<4x1xf32>
    %131 = math.rsqrt %130 : vector<4x1xf32>
    %132 = vector.broadcast %131 : vector<4x1xf32> to vector<4x128xf32>
    %133 = arith.mulf %128, %132 : vector<4x128xf32>
    %c0_46 = arith.constant 0 : index
    %c0_47 = arith.constant 0 : index
    %134 = vector.load %arg5[%c0_46, %c0_47] : memref<4x1xf32, #tpu.memory_space<vmem>>, vector<4x1xf32>
    %135 = vector.broadcast %134 : vector<4x1xf32> to vector<4x128xf32>
    %136 = arith.mulf %133, %135 : vector<4x128xf32>
    %c0_48 = arith.constant 0 : index
    %c0_49 = arith.constant 0 : index
    %137 = vector.load %arg6[%c0_48, %c0_49] : memref<4x1xf32, #tpu.memory_space<vmem>>, vector<4x1xf32>
    %138 = vector.broadcast %137 : vector<4x1xf32> to vector<4x128xf32>
    %139 = arith.addf %136, %138 : vector<4x128xf32>
    %140 = arith.addf %139, %0 : vector<4x128xf32>
    %cst_50 = arith.constant 0.000000e+00 : f32
    %141 = vector.broadcast %cst_50 : f32 to vector<4x128xf32>
    %142 = arith.maximumf %140, %141 : vector<4x128xf32>
    %c0_51 = arith.constant 0 : index
    %c0_52 = arith.constant 0 : index
    %143 = vector.load %arg7[%c0_51, %c0_52] : memref<4x128xf32, #tpu.memory_space<vmem>>, vector<4x128xf32>
    tpu.vector_store %arg7[%c0_51, %c0_52], %142 {strides = array<i32>} : memref<4x128xf32, #tpu.memory_space<vmem>>, vector<4x128xf32>,
    return
  }
}

</mosaic_0001>

<llo_original>
// kernel: tpu_custom_call.1
$region0: #{tpu_custom_call.1}
  #allocation0 [shape = 'u32[]', space=smem, size = 0x4, offset = 0x4, fixed_abs, tag = 'smem constant byte address 0x4 - core index']
  #allocation1 [shape = 'u32[144,128]{1,0:T(1,128)}', space=vmem, size = 0x12000, scoped, tag = 'internal scratch']
  %s0 = inlined_call_operand.vmem [shape: f32[4,128], index: 0, kind: input, shape index: {}]
  %s1 = inlined_call_operand.vmem [shape: bf16[4,12], index: 1, kind: input, shape index: {}]
  %s2 = inlined_call_operand.vmem [shape: bf16[4,12], index: 2, kind: input, shape index: {}]
  %s3 = inlined_call_operand.vmem [shape: f32[4,1], index: 3, kind: input, shape index: {}]
  %s4 = inlined_call_operand.vmem [shape: f32[4,1], index: 4, kind: input, shape index: {}]
  %s5 = inlined_call_operand.vmem [shape: f32[4,1], index: 5, kind: input, shape index: {}]
  %s6 = inlined_call_operand.vmem [shape: f32[4,1], index: 6, kind: input, shape index: {}]
  %s7 = inlined_call_operand.hbm [shape: f32[4,128], index: 7, kind: output, shape index: {}]
  %s8 = sld [smem:[#allocation0]]
  $region38: #{tpu_custom_call.1} parent=0
    _
  %s10 = ssub.s32 1, %s8
  %s11 = scalar_select 0, %s10, %s8
  $region1: #{tpu_custom_call.1} parent=0
    #allocation2 [shape = 'u8[2048]{0}', space=vmem, size = 0x800, scoped, tag = 'output window, operand 0, single buffered']
    #allocation3 [shape = 's32[1]{0}', space=sflag, size = 0x4, scoped, tag = 'scoped memory for tpu_custom_call.1']
    %12 = vsyncpa [#allocation3], 0
    // Predicated region
    $region2: #{tpu_custom_call.1} parent=1 // pred_check
      _
    $region3: #{tpu_custom_call.1} parent=1 // pred_check_branch
      %14 = sbr.rel (0) target = $region5
    $region4: #{tpu_custom_call.1} parent=1 // pred_region
      _
    $region5: #{tpu_custom_call.1} parent=1 // pred_fallthru
      _
    // Predicated region
    $region6: #{tpu_custom_call.1} parent=1 // pred_check
      _
    $region7: #{tpu_custom_call.1} parent=1 // pred_check_branch
      %16 = sbr.rel (0) target = $region9
    $region8: #{tpu_custom_call.1} parent=1 // pred_region
      _
    $region9: #{tpu_custom_call.1} parent=1 // pred_fallthru
      _
    // Predicated region
    $region10: #{tpu_custom_call.1} parent=1 // pred_check
      _
    $region11: #{tpu_custom_call.1} parent=1 // pred_check_branch
      %18 = sbr.rel (0) target = $region13
    $region12: #{tpu_custom_call.1} parent=1 // pred_region
      _
    $region13: #{tpu_custom_call.1} parent=1 // pred_fallthru
      _
    // Predicated region
    $region14: #{tpu_custom_call.1} parent=1 // pred_check
      _
    $region15: #{tpu_custom_call.1} parent=1 // pred_check_branch
      %20 = sbr.rel (0) target = $region17
    $region16: #{tpu_custom_call.1} parent=1 // pred_region
      _
    $region17: #{tpu_custom_call.1} parent=1 // pred_fallthru
      _
    // Predicated region
    $region18: #{tpu_custom_call.1} parent=1 // pred_check
      _
    $region19: #{tpu_custom_call.1} parent=1 // pred_check_branch
      %22 = sbr.rel (0) target = $region21
    $region20: #{tpu_custom_call.1} parent=1 // pred_region
      _
    $region21: #{tpu_custom_call.1} parent=1 // pred_fallthru
      _
    // Predicated region
    $region22: #{tpu_custom_call.1} parent=1 // pred_check
      _
    $region23: #{tpu_custom_call.1} parent=1 // pred_check_branch
      %24 = sbr.rel (0) target = $region25
    $region24: #{tpu_custom_call.1} parent=1 // pred_region
      _
    $region25: #{tpu_custom_call.1} parent=1 // pred_fallthru
      _
    // Predicated region
    $region26: #{tpu_custom_call.1} parent=1 // pred_check
      _
    $region27: #{tpu_custom_call.1} parent=1 // pred_check_branch
      %26 = sbr.rel (0) target = $region29
    $region28: #{tpu_custom_call.1} parent=1 // pred_region
      _
    $region29: #{tpu_custom_call.1} parent=1 // pred_fallthru
      _
    %v28 = vld [vmem:[%s0] sm:$0xf]
    %v29 = vlaneseq
    %v30 = vand.u32 %v29, 127
    %vm31 = vcmp.lt.s32.totalorder %v30, 0
    %v32 = vsub.s32 0, %v30
    %v33 = vsel %vm31, %v32, %v30
    %v34 = vshrl.u32 %v33, 4
    %v35 = vand.u32 %v33, 15
    %v36 = vsub.s32 0, %v35
    %v37 = vsel %vm31, %v36, %v35
    %vm38 = vcmp.ne.s32.totalorder %v37, 0
    %vm39 = vcmp.lt.s32.totalorder %v37, 0
    %vm40 = vmand %vm39, %vm38
    %v41 = vadd.s32 %v37, 16
    %v42 = vsel %vm40, %v41, %v37
    %vm43 = vcmp.lt.s32.totalorder %v30, 32
    %v44 = vadd.s32 %v42, 4294967295
    %vm45 = vcmp.ge.s32.totalorder %v44, 0
    %vm46 = vcmp.lt.s32.totalorder %v44, 16
    %vm47 = vmand %vm45, %vm46
    %vm48 = vmand %vm47, %vm43
    %vm49 = vcmp.ge.s32.totalorder %v42, 0
    %vm50 = vcmp.lt.s32.totalorder %v42, 16
    %vm51 = vmand %vm49, %vm50
    %vm52 = vmand %vm51, %vm43
    %v53 = vadd.s32 %v42, 1
    %vm54 = vcmp.ge.s32.totalorder %v53, 0
    %vm55 = vcmp.lt.s32.totalorder %v53, 16
    %vm56 = vmand %vm54, %vm55
    %vm57 = vmand %vm56, %vm43
    %v58 = vld [vmem:[%s1] sm:$0x3]
    %59 = vrot.lane.b32.xlu0 %v28, 1
    %v60 = vpop.permute.xlu0 %59
    %v61 = vsel %vm48, 1, 0
    %vm62 = vcmp.eq.s32.totalorder %v61, 1
    %v63 = vsel %vm62, %v60, 0.0
    %v64 = vsel %vm52, 1, 0
    %vm65 = vcmp.eq.s32.totalorder %v64, 1
    %v66 = vsel %vm65, %v28, 0.0
    %67 = vrot.lane.b32.xlu0 %v28, 127
    %v68 = vpop.permute.xlu0 %67
    %v69 = vsel %vm57, 1, 0
    %vm70 = vcmp.eq.s32.totalorder %v69, 1
    %v71 = vsel %vm70, %v68, 0.0
    %v73 = vrot.slane %v66, 4
    %vm75 = vcmask 1043456
    %v76 = vsel %vm75, %v63, %v73
    %v77 = vpack.c.bf16 %v71, %v76
    %vm78 = vcmask 97280
    %v80 = vsel %vm78, %v58, 0
    %vm82 = vcmask 1045504
    %v84 = vsel %vm82, %v77, 0
    %86 = vmatprep.subr.bf16.mxu0 0
    %87 = vmatpush1.bf16.msra.mxu0 0
    %88 = vmatprep.subr.bf16.mxu0 0
    %89 = vmatpush1.bf16.msra.mxu0 0
    %90 = vmatprep.subr.bf16.mxu0 0
    %91 = vmatpush1.bf16.msra.mxu0 0
    %92 = vmatprep.subr.bf16.mxu0 0
    %93 = vmatpush1.bf16.msra.mxu0 0
    %94 = vmatprep.subr.bf16.mxu0 0
    %95 = vmatpush1.bf16.msra.mxu0 0
    %96 = vmatprep.subr.bf16.mxu0 0
    %97 = vmatpush1.bf16.msra.mxu0 0
    %98 = vmatprep.subr.bf16.mxu0 0
    %99 = vmatpush1.bf16.msra.mxu0 0
    %100 = vmatprep.subr.bf16.mxu0 0
    %101 = vmatpush1.bf16.msra.mxu0 %v84
    %102 = vmatprep.subr.bf16.mxu0 0
    %103 = vmatpush2.bf16.msra.mxu0 0
    %104 = vmatprep.subr.bf16.mxu0 0
    %105 = vmatpush2.bf16.msra.mxu0 0
    %106 = vmatprep.subr.bf16.mxu0 0
    %107 = vmatpush2.bf16.msra.mxu0 0
    %108 = vmatprep.subr.bf16.mxu0 0
    %109 = vmatpush2.bf16.msra.mxu0 0
    %110 = vmatprep.subr.bf16.mxu0 0
    %111 = vmatpush2.bf16.msra.mxu0 0
    %112 = vmatprep.subr.bf16.mxu0 0
    %113 = vmatpush2.bf16.msra.mxu0 0
    %114 = vmatprep.subr.bf16.mxu0 0
    %115 = vmatpush2.bf16.msra.mxu0 0
    %116 = vmatprep.subr.bf16.mxu0 0
    %117 = vmatpush2.bf16.msra.mxu0 0
    %118 = vmatprep.mubr.bf16.mxu0 0
    %119 = vmatmul.mubr.bf16.gmra.mxu0 %v80
    %v120 = vpop.f32.mrf.mxu0
    %v121 = vadd.f32 0.0, %v120
    %v122 = vpop.f32.mrf.mxu0
    %v123 = vpop.f32.mrf.mxu0
    %v124 = vpop.f32.mrf.mxu0
    %125 = vdwg.mxu0
    %v126 = vsel %vm75, %v121, 0.0
    %127 = vadd.xlane.f32.xlu0 %v126
    %v128 = vpop.xlane.xlu0 %127
    %v129 = vmul.f32 %v121, %v121
    %v130 = vsel %vm75, %v129, 0.0
    %131 = vadd.xlane.f32.xlu0 %v130
    %v132 = vpop.xlane.xlu0 %131
    %v133 = vmul.f32 %v128, 0.03125
    %v134 = vmul.f32 %v132, 0.03125
    %v135 = vmul.f32 %v133, %v133
    %v136 = vsub.f32 %v134, %v135
    %v137 = vmax.f32 %v136, 0.0
    %v138 = vsub.f32 %v121, %v133
    %v139 = vadd.f32 %v137, 1e-05
    %v140 = vrsqrt.pop %v139
    %v141 = vmul.f32 %v138, %v140
    %v142 = vld [vmem:[%s3] sm:$0xf]
    %144 = vset.pattern.permute.xlu0 0
    %145 = vperm.xlu0 %144, %v142
    %v146 = vpop.permute.xlu0 %145
    %v148 = vmul.f32 %v141, %v146
    %v149 = vld [vmem:[%s4] sm:$0xf]
    %151 = vset.pattern.permute.xlu0 0
    %152 = vperm.xlu0 %151, %v149
    %v153 = vpop.permute.xlu0 %152
    %v155 = vadd.f32 %v148, %v153
    %v156 = vmax.f32 %v155, 0.0
    %v157 = vld [vmem:[%s2] sm:$0x3]
    %158 = vrot.lane.b32.xlu0 %v156, 1
    %v159 = vpop.permute.xlu0 %158
    %v160 = vsel %vm62, %v159, 0.0
    %v161 = vsel %vm65, %v156, 0.0
    %162 = vrot.lane.b32.xlu0 %v156, 127
    %v163 = vpop.permute.xlu0 %162
    %v164 = vsel %vm70, %v163, 0.0
    %v166 = vrot.slane %v161, 4
    %v168 = vsel %vm75, %v160, %v166
    %v169 = vpack.c.bf16 %v164, %v168
    %v171 = vsel %vm78, %v157, 0
    %v174 = vsel %vm82, %v169, 0
    %176 = vmatprep.subr.bf16.mxu0 0
    %177 = vmatpush1.bf16.msra.mxu0 0
    %178 = vmatprep.subr.bf16.mxu0 0
    %179 = vmatpush1.bf16.msra.mxu0 0
    %180 = vmatprep.subr.bf16.mxu0 0
    %181 = vmatpush1.bf16.msra.mxu0 0
    %182 = vmatprep.subr.bf16.mxu0 0
    %183 = vmatpush1.bf16.msra.mxu0 0
    %184 = vmatprep.subr.bf16.mxu0 0
    %185 = vmatpush1.bf16.msra.mxu0 0
    %186 = vmatprep.subr.bf16.mxu0 0
    %187 = vmatpush1.bf16.msra.mxu0 0
    %188 = vmatprep.subr.bf16.mxu0 0
    %189 = vmatpush1.bf16.msra.mxu0 0
    %190 = vmatprep.subr.bf16.mxu0 0
    %191 = vmatpush1.bf16.msra.mxu0 %v174
    %192 = vmatprep.subr.bf16.mxu0 0
    %193 = vmatpush2.bf16.msra.mxu0 0
    %194 = vmatprep.subr.bf16.mxu0 0
    %195 = vmatpush2.bf16.msra.mxu0 0
    %196 = vmatprep.subr.bf16.mxu0 0
    %197 = vmatpush2.bf16.msra.mxu0 0
    %198 = vmatprep.subr.bf16.mxu0 0
    %199 = vmatpush2.bf16.msra.mxu0 0
    %200 = vmatprep.subr.bf16.mxu0 0
    %201 = vmatpush2.bf16.msra.mxu0 0
    %202 = vmatprep.subr.bf16.mxu0 0
    %203 = vmatpush2.bf16.msra.mxu0 0
    %204 = vmatprep.subr.bf16.mxu0 0
    %205 = vmatpush2.bf16.msra.mxu0 0
    %206 = vmatprep.subr.bf16.mxu0 0
    %207 = vmatpush2.bf16.msra.mxu0 0
    %208 = vmatprep.mubr.bf16.mxu0 0
    %209 = vmatmul.mubr.bf16.gmra.mxu0 %v171
    %v210 = vpop.f32.mrf.mxu0
    %v211 = vadd.f32 0.0, %v210
    %v212 = vpop.f32.mrf.mxu0
    %v213 = vpop.f32.mrf.mxu0
    %v214 = vpop.f32.mrf.mxu0
    %215 = vdwg.mxu0
    %v216 = vsel %vm75, %v211, 0.0
    %217 = vadd.xlane.f32.xlu0 %v216
    %v218 = vpop.xlane.xlu0 %217
    %v219 = vmul.f32 %v211, %v211
    %v220 = vsel %vm75, %v219, 0.0
    %221 = vadd.xlane.f32.xlu0 %v220
    %v222 = vpop.xlane.xlu0 %221
    %v223 = vmul.f32 %v218, 0.03125
    %v224 = vmul.f32 %v222, 0.03125
    %v225 = vmul.f32 %v223, %v223
    %v226 = vsub.f32 %v224, %v225
    %v227 = vmax.f32 %v226, 0.0
    %v228 = vsub.f32 %v211, %v223
    %v229 = vadd.f32 %v227, 1e-05
    %v230 = vrsqrt.pop %v229
    %v231 = vmul.f32 %v228, %v230
    %v232 = vld [vmem:[%s5] sm:$0xf]
    %234 = vset.pattern.permute.xlu0 0
    %235 = vperm.xlu0 %234, %v232
    %v236 = vpop.permute.xlu0 %235
    %v238 = vmul.f32 %v231, %v236
    %v239 = vld [vmem:[%s6] sm:$0xf]
    %241 = vset.pattern.permute.xlu0 0
    %242 = vperm.xlu0 %241, %v239
    %v243 = vpop.permute.xlu0 %242
    %v245 = vadd.f32 %v238, %v243
    %v246 = vadd.f32 %v245, %v28
    %v247 = vmax.f32 %v246, 0.0
    %248 = vst [vmem:[#allocation2] sm:$0xf] %v247
    // Predicated region
    $region30: #{tpu_custom_call.1} parent=1 // pred_check
      _
    $region31: #{tpu_custom_call.1} parent=1 // pred_check_branch
      %250 = sbr.rel (0) target = $region33
    $region32: #{tpu_custom_call.1} parent=1 // pred_region
      %s252 = ssub.s32 64, 64
      %253 = vsyncadd [#allocation3], %s252
      %s255 = sshll.u32 [#allocation2], 4
      %s256 = int_to_ptr.vmem [resolvable:$true] %s255
      %258 = dma.vmem_to_hbm [thread:$0]  %s256, 64, %s7, [#allocation3]
    $region33: #{tpu_custom_call.1} parent=1 // pred_fallthru
      _
    // Predicated region
    $region34: #{tpu_custom_call.1} parent=1 // pred_check
      _
    $region35: #{tpu_custom_call.1} parent=1 // pred_check_branch
      %260 = sbr.rel (0) target = $region37
    $region36: #{tpu_custom_call.1} parent=1 // pred_region
      %261 = dma.done [#allocation3], 64
    $region37: #{tpu_custom_call.1} parent=1 // pred_fallthru
      _
    %262 = vsyncpa [#allocation3], 1

</llo_original>
